<compile_context>
chip_gen: v5e
topology: v5e:2x2
jax: 0.10.0
libtpu: 0.0.40
codegen_flags: <defaults>
</compile_context>

<pallas_src>
import jax
import jax.numpy as jnp
from jax import lax
from jax.experimental import pallas as pl
from jax.experimental.pallas import tpu as pltpu

# ---------------------------------------------------------------------------
# Fixed network sizes and packed-parameter layout (rows of a (P_ROWS, 128)
# buffer; every section starts on an 8-sublane boundary).
# ---------------------------------------------------------------------------
H1, H2 = 32, 16
LANES = 128

ROW_W1T = 0      # W1^T : (H1, F)   rows [  0,  32)
ROW_W2T = 32     # W2^T : (H2, H1)  rows [ 32,  48)
ROW_W3C = 48     # w3 col (H2, 1)   rows [ 48,  64)  (column 0)
ROW_B1 = 64      # b1 col (H1, 1)   rows [ 64,  96)
ROW_B2 = 96      # b2 col (H2, 1)   rows [ 96, 112)
ROW_B3 = 112     # b3     (1, 1)    rows [112, 120)
P_ROWS = 120     # multiple of 8


def _round_up(n: int, m: int) -> int:
    return ((n + m - 1) // m) * m


def pack_params(w1, b1, w2, b2, w3, b3, dtype=jnp.bfloat16):
    """Pack weights/biases into a single (P_ROWS, 128) tile-aligned buffer.

    w1: (F, H1), b1: (H1,), w2: (H1, H2), b2: (H2,), w3: (H2, 1), b3: (1,)
    W1/W2 are stored transposed (kernel computes W^T @ x^T so batch stays on
    lanes); w3 and the biases are stored as columns so they broadcast along
    the batch lanes.  `dtype` is the HBM storage dtype (bf16 halves the param
    + activation streams; matmul accumulation stays f32 in the kernel).
    """
    F = w1.shape[0]
    assert F <= LANES, "input_features must be <= 128 for this packed layout"
    p = jnp.zeros((P_ROWS, LANES), dtype)
    p = p.at[ROW_W1T:ROW_W1T + H1, 0:F].set(w1.T.astype(dtype))
    p = p.at[ROW_W2T:ROW_W2T + H2, 0:H1].set(w2.T.astype(dtype))
    p = p.at[ROW_W3C:ROW_W3C + H2, 0:1].set(w3.astype(dtype))
    p = p.at[ROW_B1:ROW_B1 + H1, 0].set(b1.astype(dtype))
    p = p.at[ROW_B2:ROW_B2 + H2, 0].set(b2.astype(dtype))
    p = p.at[ROW_B3:ROW_B3 + 1, 0].set(b3.astype(dtype))
    return p


def _make_kernel(num_features: int):
    F = num_features

    def titanic_mlp_kernel(p_ref, x_ref, ot_ref):
        # p_ref : (P_ROWS, 128) packed params (VMEM-resident across the grid)
        # x_ref : (TILE_B, F)   batch-major input block (contiguous HBM read)
        # ot_ref: (1, TILE_B)   lane-dense f32 logits for this batch block
        cdt = p_ref.dtype                       # storage/compute dtype (bf16 or f32)
        x = x_ref[...]                          # (TB, F)

        # --- Layer 1: contract F, put batch on the lane axis -> (32, TB) ---
        w1t = p_ref[ROW_W1T:ROW_W1T + H1, 0:F]                      # (32, F)
        b1 = p_ref[ROW_B1:ROW_B1 + H1, 0:1].astype(jnp.float32)     # (32, 1)
        h1 = lax.dot_general(w1t, x, (((1,), (1,)), ((), ())),
                             preferred_element_type=jnp.float32)    # (32, TB)
        h1 = jnp.maximum(h1 + b1, 0.0)          # f32 bias + ReLU
        # Dropout(p=0.4): identity in eval/inference mode.

        # --- Layer 2: (16,32) x (32,TB) on the MXU, f32 accumulate ---------
        w2t = p_ref[ROW_W2T:ROW_W2T + H2, 0:H1]                     # (16, 32)
        b2 = p_ref[ROW_B2:ROW_B2 + H2, 0:1].astype(jnp.float32)     # (16, 1)
        h2 = jnp.dot(w2t, h1.astype(cdt),
                     preferred_element_type=jnp.float32)            # (16, TB)
        h2 = jnp.maximum(h2 + b2, 0.0)
        # Dropout(p=0.4): identity in eval/inference mode.

        # --- Layer 3: 1 output row -> VPU mul + sublane reduce (skip MXU) --
        w3c = p_ref[ROW_W3C:ROW_W3C + H2, 0:1].astype(jnp.float32)  # (16, 1)
        b3 = p_ref[ROW_B3:ROW_B3 + 1, 0:1].astype(jnp.float32)      # (1, 1)
        ot_ref[...] = jnp.sum(w3c * h2, axis=0, keepdims=True) + b3  # (1, TB)

    return titanic_mlp_kernel


def titanic_net_forward(x, packed_params, *, tile_b: int = 4096):
    """x: (B, F), packed_params: (P_ROWS, 128) -> logits (B, 1) f32.

    x is cast to the packed-param storage dtype (no-op if it already matches);
    for zero wrapper-side HBM overhead use a batch that is a multiple of the
    chosen batch tile.
    """
    B, F = x.shape
    dtype = packed_params.dtype
    in_itemsize = int(jnp.dtype(dtype).itemsize)

    # --- Batch tiling: big lane-aligned tiles, but keep >= 2 grid steps when
    # the batch allows it so v7x's two TensorCores both get work.
    b_lanes = _round_up(max(B, 1), LANES)
    lane_tile = min(tile_b, b_lanes)
    if b_lanes // lane_tile < 2 and b_lanes >= 2 * LANES:
        lane_tile = _round_up(b_lanes // 2, LANES)
    b_pad = _round_up(B, lane_tile)
    grid = (b_pad // lane_tile,)

    # Pad/cast only when needed (no HBM round-trip when B % lane_tile == 0
    # and x is already stored in `dtype`).
    if b_pad != B:
        x_in = jnp.zeros((b_pad, F), dtype).at[:B, :].set(x.astype(dtype))
    else:
        x_in = x.astype(dtype)

    # --- VMEM budget: double-buffered lane-padded x block + params + f32
    # intermediates, 2x headroom, capped below v7x's 64 MiB physical VMEM.
    x_block_bytes = lane_tile * LANES * in_itemsize          # lane-padded in VMEM
    interm_bytes = (H1 + H2 + 2) * lane_tile * 4
    vmem_need = (2 * x_block_bytes + 2 * P_ROWS * LANES * in_itemsize
                 + 2 * lane_tile * 4 + interm_bytes)
    vmem_limit = int(min(max(2 * vmem_need, 32 << 20), 60 << 20))

    flops = 2 * B * (F * H1 + H1 * H2 + H2 * 1)
    bytes_accessed = (b_pad * F * in_itemsize            # x stream (contiguous)
                      + P_ROWS * LANES * in_itemsize     # params, fetched once
                      + b_pad * 4)                       # lane-dense f32 output

    out_t = pl.pallas_call(
        _make_kernel(F),
        out_shape=jax.ShapeDtypeStruct((1, b_pad), jnp.float32),
        grid_spec=pltpu.PrefetchScalarGridSpec(
            num_scalar_prefetch=0,
            grid=grid,
            in_specs=[
                # Packed params: constant index_map -> DMA'd once, VMEM-resident.
                pl.BlockSpec((P_ROWS, LANES), lambda i: (0, 0)),
                # x: batch-major blocks streamed over the grid (auto-pipelined).
                pl.BlockSpec((lane_tile, F), lambda i: (i, 0)),
            ],
            out_specs=pl.BlockSpec((1, lane_tile), lambda i: (0, i)),
        ),
        compiler_params=pltpu.CompilerParams(
            dimension_semantics=("parallel",),
            vmem_limit_bytes=vmem_limit),
        cost_estimate=pl.CostEstimate(
            flops=flops, transcendentals=0, bytes_accessed=bytes_accessed),
    )(packed_params, x_in)

    return out_t[0, :B].reshape(B, 1)


def reference_forward(x, w1, b1, w2, b2, w3, b3):
    h1 = jnp.maximum(x @ w1 + b1, 0.0)
    h2 = jnp.maximum(h1 @ w2 + b2, 0.0)
    return h2 @ w3 + b3


if __name__ == "__main__":
    INPUT_FEATURES = 10   # typical preprocessed Titanic feature count
    BATCH = 8

    key = jax.random.PRNGKey(0)
    kx, k1, k2, k3, k4, k5, k6, kb = jax.random.split(key, 8)
    x = jax.random.normal(kx, (BATCH, INPUT_FEATURES), jnp.float32)

    scale = 0.1
    w1 = scale * jax.random.normal(k1, (INPUT_FEATURES, H1), jnp.float32)
    b1 = scale * jax.random.normal(k2, (H1,), jnp.float32)
    w2 = scale * jax.random.normal(k3, (H1, H2), jnp.float32)
    b2 = scale * jax.random.normal(k4, (H2,), jnp.float32)
    w3 = scale * jax.random.normal(k5, (H2, 1), jnp.float32)
    b3 = scale * jax.random.normal(k6, (1,), jnp.float32)

    ref = reference_forward(x, w1, b1, w2, b2, w3, b3)

    # --- Exact f32 path (strict check) -------------------------------------
    packed_f32 = pack_params(w1, b1, w2, b2, w3, b3, dtype=jnp.float32)
    out_f32 = jax.block_until_ready(titanic_net_forward(x, packed_f32))
    assert out_f32.shape == (BATCH, 1), out_f32.shape
    assert jnp.allclose(out_f32, ref, atol=2e-5, rtol=1e-4), (out_f32, ref)

    # --- Default bf16-storage path (halved HBM stream; loose check) --------
    packed_bf16 = pack_params(w1, b1, w2, b2, w3, b3)          # bf16 default
    out_bf16 = jax.block_until_ready(titanic_net_forward(x, packed_bf16))
    assert out_bf16.shape == (BATCH, 1), out_bf16.shape
    assert jnp.allclose(out_bf16, ref, atol=3e-2, rtol=3e-2), (out_bf16, ref)

    # --- Multi-block grid + batch padding path ------------------------------
    x_big = jax.random.normal(kb, (300, INPUT_FEATURES), jnp.float32)
    ref_big = reference_forward(x_big, w1, b1, w2, b2, w3, b3)
    out_big = jax.block_until_ready(titanic_net_forward(x_big, packed_bf16))
    assert out_big.shape == (300, 1), out_big.shape
    assert jnp.allclose(out_big, ref_big, atol=3e-2, rtol=3e-2), (out_big, ref_big)

    print("KERNEL_OK")
</pallas_src>

<mosaic_0001>
module attributes {stable_mosaic.version = 11 : i64} {
  func.func @titanic_mlp_kernel(%arg0: i32, %arg1: memref<120x128xf32, #tpu.memory_space<vmem>>, %arg2: memref<128x10xf32, #tpu.memory_space<vmem>>, %arg3: memref<1x128xf32, #tpu.memory_space<vmem>>) attributes {dimension_semantics = [#tpu.dimension_semantics<parallel>], iteration_bounds = array<i64: 1>, scalar_prefetch = 0 : i64, scratch_operands = 0 : i64, tpu.core_type = #tpu.core_type<tc>, window_params = [{pipeline_mode = #tpu.pipeline_mode<synchronous>, transform_indices = @transform_0, window_bounds = array<i64: 120, 128>}, {transform_indices = @transform_1, window_bounds = array<i64: 128, 10>}, {transform_indices = @transform_2, window_bounds = array<i64: 1, 128>}]} {
    %c0 = arith.constant 0 : index
    %c0_0 = arith.constant 0 : index
    %0 = vector.load %arg2[%c0, %c0_0] : memref<128x10xf32, #tpu.memory_space<vmem>>, vector<128x10xf32>
    %c0_1 = arith.constant 0 : index
    %c0_2 = arith.constant 0 : index
    %1 = vector.load %arg1[%c0_1, %c0_2] : memref<120x128xf32, #tpu.memory_space<vmem>>, vector<32x10xf32>
    %c64 = arith.constant 64 : index
    %c0_3 = arith.constant 0 : index
    %2 = vector.load %arg1[%c64, %c0_3] : memref<120x128xf32, #tpu.memory_space<vmem>>, vector<32x1xf32>
    %cst = arith.constant dense<0.000000e+00> : vector<32x128xf32>
    %3 = tpu.matmul %1, %0, %cst {dimension_numbers = #tpu.dot_dimension_numbers<[1], [1], [0], [0], [0, 0, 1, 0], [], []>} : vector<32x10xf32>, vector<128x10xf32>, vector<32x128xf32> -> vector<32x128xf32>
    %4 = vector.broadcast %2 : vector<32x1xf32> to vector<32x128xf32>
    %5 = arith.addf %3, %4 : vector<32x128xf32>
    %cst_4 = arith.constant 0.000000e+00 : f32
    %6 = vector.broadcast %cst_4 : f32 to vector<32x128xf32>
    %7 = arith.maximumf %5, %6 : vector<32x128xf32>
    %c32 = arith.constant 32 : index
    %c0_5 = arith.constant 0 : index
    %8 = vector.load %arg1[%c32, %c0_5] : memref<120x128xf32, #tpu.memory_space<vmem>>, vector<16x32xf32>
    %c96 = arith.constant 96 : index
    %c0_6 = arith.constant 0 : index
    %9 = vector.load %arg1[%c96, %c0_6] : memref<120x128xf32, #tpu.memory_space<vmem>>, vector<16x1xf32>
    %cst_7 = arith.constant dense<0.000000e+00> : vector<16x128xf32>
    %10 = tpu.matmul %8, %7, %cst_7 {dimension_numbers = #tpu.dot_dimension_numbers<[1], [0], [0], [1], [0, 0, 1, 1], [], []>} : vector<16x32xf32>, vector<32x128xf32>, vector<16x128xf32> -> vector<16x128xf32>
    %11 = vector.broadcast %9 : vector<16x1xf32> to vector<16x128xf32>
    %12 = arith.addf %10, %11 : vector<16x128xf32>
    %cst_8 = arith.constant 0.000000e+00 : f32
    %13 = vector.broadcast %cst_8 : f32 to vector<16x128xf32>
    %14 = arith.maximumf %12, %13 : vector<16x128xf32>
    %c48 = arith.constant 48 : index
    %c0_9 = arith.constant 0 : index
    %15 = vector.load %arg1[%c48, %c0_9] : memref<120x128xf32, #tpu.memory_space<vmem>>, vector<16x1xf32>
    %c112 = arith.constant 112 : index
    %c0_10 = arith.constant 0 : index
    %16 = vector.load %arg1[%c112, %c0_10] : memref<120x128xf32, #tpu.memory_space<vmem>>, vector<1x1xf32>
    %17 = vector.broadcast %15 : vector<16x1xf32> to vector<16x128xf32>
    %18 = arith.mulf %17, %14 : vector<16x128xf32>
    %cst_11 = arith.constant dense<0.000000e+00> : vector<128xf32>
    %19 = vector.multi_reduction <add>, %18, %cst_11 [0] : vector<16x128xf32> to vector<128xf32>
    %20 = vector.shape_cast %19 : vector<128xf32> to vector<1x128xf32>
    %21 = vector.broadcast %16 : vector<1x1xf32> to vector<1x128xf32>
    %22 = arith.addf %20, %21 : vector<1x128xf32>
    %c0_12 = arith.constant 0 : index
    %c0_13 = arith.constant 0 : index
    %23 = vector.load %arg3[%c0_12, %c0_13] : memref<1x128xf32, #tpu.memory_space<vmem>>, vector<1x128xf32>
    tpu.vector_store %arg3[%c0_12, %c0_13], %22 {strides = array<i32>} : memref<1x128xf32, #tpu.memory_space<vmem>>, vector<1x128xf32>,
    return
  }
  func.func @transform_0(%arg0: i32) -> (i32, i32) {
    %c0_i32 = arith.constant 0 : i32
    %c0_i32_0 = arith.constant 0 : i32
    %c0_i32_1 = arith.constant 0 : i32
    return %c0_i32, %c0_i32_0 : i32, i32
  }
  func.func @transform_1(%arg0: i32) -> (i32, i32) {
    %c0_i32 = arith.constant 0 : i32
    %c0_i32_0 = arith.constant 0 : i32
    return %arg0, %c0_i32 : i32, i32
  }
  func.func @transform_2(%arg0: i32) -> (i32, i32) {
    %c0_i32 = arith.constant 0 : i32
    %c0_i32_0 = arith.constant 0 : i32
    return %c0_i32, %arg0 : i32, i32
  }
}

</mosaic_0001>

<llo_original>
// kernel: tpu_custom_call.1
$region0: #{tpu_custom_call.1}
  #allocation0 [shape = 'u32[]', space=smem, size = 0x4, offset = 0x4, fixed_abs, tag = 'smem constant byte address 0x4 - core index']
  #allocation1 [shape = 'u32[72,128]{1,0:T(1,128)}', space=vmem, size = 0x9000, scoped, tag = 'internal scratch']
  %s0 = inlined_call_operand.vmem [shape: f32[120,128], index: 0, kind: input, shape index: {}]
  %s1 = inlined_call_operand.vmem [shape: f32[128,10], index: 1, kind: input, shape index: {}]
  %s2 = inlined_call_operand.hbm [shape: f32[1,128], index: 2, kind: output, shape index: {}]
  %s3 = sld [smem:[#allocation0]]
  $region18: #{tpu_custom_call.1} parent=0
    _
  %s5 = ssub.s32 1, %s3
  %s6 = scalar_select 0, %s5, %s3
  $region1: #{tpu_custom_call.1} parent=0
    #allocation2 [shape = 'u8[512]{0}', space=vmem, size = 0x400, scoped, tag = 'output window, operand 0, single buffered']
    #allocation3 [shape = 's32[1]{0}', space=sflag, size = 0x4, scoped, tag = 'scoped memory for tpu_custom_call.1']
    %7 = vsyncpa [#allocation3], 0
    // Predicated region
    $region2: #{tpu_custom_call.1} parent=1 // pred_check
      _
    $region3: #{tpu_custom_call.1} parent=1 // pred_check_branch
      %9 = sbr.rel (0) target = $region5
    $region4: #{tpu_custom_call.1} parent=1 // pred_region
      _
    $region5: #{tpu_custom_call.1} parent=1 // pred_fallthru
      _
    // Predicated region
    $region6: #{tpu_custom_call.1} parent=1 // pred_check
      _
    $region7: #{tpu_custom_call.1} parent=1 // pred_check_branch
      %11 = sbr.rel (0) target = $region9
    $region8: #{tpu_custom_call.1} parent=1 // pred_region
      _
    $region9: #{tpu_custom_call.1} parent=1 // pred_fallthru
      _
    %v12 = vld [vmem:[%s1] sm:$0xff]
    %v13 = vld [vmem:[%s1 + $0x8] sm:$0xff]
    %v14 = vld [vmem:[%s1 + $0x10] sm:$0xff]
    %v15 = vld [vmem:[%s1 + $0x18] sm:$0xff]
    %v16 = vld [vmem:[%s1 + $0x20] sm:$0xff]
    %v17 = vld [vmem:[%s1 + $0x28] sm:$0xff]
    %v18 = vld [vmem:[%s1 + $0x30] sm:$0xff]
    %v19 = vld [vmem:[%s1 + $0x38] sm:$0xff]
    %v20 = vld [vmem:[%s1 + $0x40] sm:$0xff]
    %v21 = vld [vmem:[%s1 + $0x48] sm:$0xff]
    %v22 = vld [vmem:[%s1 + $0x50] sm:$0xff]
    %v23 = vld [vmem:[%s1 + $0x58] sm:$0xff]
    %v24 = vld [vmem:[%s1 + $0x60] sm:$0xff]
    %v25 = vld [vmem:[%s1 + $0x68] sm:$0xff]
    %v26 = vld [vmem:[%s1 + $0x70] sm:$0xff]
    %v27 = vld [vmem:[%s1 + $0x78] sm:$0xff]
    %v28 = vld [vmem:[%s0] sm:$0xff]
    %v29 = vld [vmem:[%s0 + $0x8] sm:$0xff]
    %v30 = vld [vmem:[%s0 + $0x10] sm:$0xff]
    %v31 = vld [vmem:[%s0 + $0x18] sm:$0xff]
    %v32 = vld [vmem:[%s0 + $0x40] sm:$0xff]
    %v33 = vld [vmem:[%s0 + $0x48] sm:$0xff]
    %v34 = vld [vmem:[%s0 + $0x50] sm:$0xff]
    %v35 = vld [vmem:[%s0 + $0x58] sm:$0xff]
    %37 = vset.pattern.permute.xlu0 0
    %38 = vperm.xlu0 %37, %v32
    %v39 = vpop.permute.xlu0 %38
    %42 = vset.pattern.permute.xlu0 0
    %43 = vperm.xlu0 %42, %v33
    %v44 = vpop.permute.xlu0 %43
    %47 = vset.pattern.permute.xlu0 0
    %48 = vperm.xlu0 %47, %v34
    %v49 = vpop.permute.xlu0 %48
    %52 = vset.pattern.permute.xlu0 0
    %53 = vperm.xlu0 %52, %v35
    %v54 = vpop.permute.xlu0 %53
    %vm56 = vcmask 80896
    %v58 = vsel %vm56, %v28, 0
    %v61 = vsel %vm56, %v29, 0
    %v64 = vsel %vm56, %v30, 0
    %v67 = vsel %vm56, %v31, 0
    %v70 = vsel %vm56, %v12, 0
    %v73 = vsel %vm56, %v13, 0
    %v76 = vsel %vm56, %v14, 0
    %v79 = vsel %vm56, %v15, 0
    %v82 = vsel %vm56, %v16, 0
    %v85 = vsel %vm56, %v17, 0
    %v88 = vsel %vm56, %v18, 0
    %v91 = vsel %vm56, %v19, 0
    %v94 = vsel %vm56, %v20, 0
    %v97 = vsel %vm56, %v21, 0
    %v100 = vsel %vm56, %v22, 0
    %v103 = vsel %vm56, %v23, 0
    %v106 = vsel %vm56, %v24, 0
    %v109 = vsel %vm56, %v25, 0
    %v112 = vsel %vm56, %v26, 0
    %v115 = vsel %vm56, %v27, 0
    %117 = vmatpush.xpose.msra.mxu0 %v115
    %118 = vmatpush.xpose.msra.mxu0 %v112
    %119 = vmatpush.xpose.msra.mxu0 %v109
    %120 = vmatpush.xpose.msra.mxu0 %v106
    %121 = vmatpush.xpose.msra.mxu0 %v103
    %122 = vmatpush.xpose.msra.mxu0 %v100
    %123 = vmatpush.xpose.msra.mxu0 %v97
    %124 = vmatpush.xpose.msra.mxu0 %v94
    %125 = vmatpush.xpose.msra.mxu0 %v91
    %126 = vmatpush.xpose.msra.mxu0 %v88
    %127 = vmatpush.xpose.msra.mxu0 %v85
    %128 = vmatpush.xpose.msra.mxu0 %v82
    %129 = vmatpush.xpose.msra.mxu0 %v79
    %130 = vmatpush.xpose.msra.mxu0 %v76
    %131 = vmatpush.xpose.msra.mxu0 %v73
    %132 = vmatpush.xpose.msra.mxu0 %v70
    %133 = vmatmul.f32.gmra.mxu0 %v58
    %v134 = vpop.f32.mrf.mxu0
    %v135 = vadd.f32 %v39, %v134
    %136 = vmatmul.f32.gmra.mxu0 %v61
    %v137 = vpop.f32.mrf.mxu0
    %v138 = vadd.f32 %v44, %v137
    %139 = vmatmul.f32.gmra.mxu0 %v64
    %v140 = vpop.f32.mrf.mxu0
    %v141 = vadd.f32 %v49, %v140
    %142 = vmatmul.f32.gmra.mxu0 %v67
    %v143 = vpop.f32.mrf.mxu0
    %v144 = vadd.f32 %v54, %v143
    %145 = vdwg.mxu0
    %v146 = vmax.f32 %v135, 0.0
    %v147 = vmax.f32 %v138, 0.0
    %v148 = vmax.f32 %v141, 0.0
    %v149 = vmax.f32 %v144, 0.0
    %v150 = vld [vmem:[%s0 + $0x20] sm:$0xff]
    %v151 = vld [vmem:[%s0 + $0x28] sm:$0xff]
    %v152 = vld [vmem:[%s0 + $0x60] sm:$0xff]
    %v153 = vld [vmem:[%s0 + $0x68] sm:$0xff]
    %155 = vset.pattern.permute.xlu0 0
    %156 = vperm.xlu0 %155, %v152
    %v157 = vpop.permute.xlu0 %156
    %160 = vset.pattern.permute.xlu0 0
    %161 = vperm.xlu0 %160, %v153
    %v162 = vpop.permute.xlu0 %161
    %vm164 = vcmask 261120
    %v166 = vsel %vm164, %v150, 0
    %v169 = vsel %vm164, %v151, 0
    %171 = vmatpush.msra.mxu0 0.0
    %172 = vmatpush.msra.mxu0 0.0
    %173 = vmatpush.msra.mxu0 0.0
    %174 = vmatpush.msra.mxu0 0.0
    %175 = vmatpush.msra.mxu0 0.0
    %176 = vmatpush.msra.mxu0 0.0
    %177 = vmatpush.msra.mxu0 0.0
    %178 = vmatpush.msra.mxu0 0.0
    %179 = vmatpush.msra.mxu0 0.0
    %180 = vmatpush.msra.mxu0 0.0
    %181 = vmatpush.msra.mxu0 0.0
    %182 = vmatpush.msra.mxu0 0.0
    %183 = vmatpush.msra.mxu0 %v149
    %184 = vmatpush.msra.mxu0 %v148
    %185 = vmatpush.msra.mxu0 %v147
    %186 = vmatpush.msra.mxu0 %v146
    %187 = vmatmul.f32.gmra.mxu0 %v166
    %v188 = vpop.f32.mrf.mxu0
    %v189 = vadd.f32 %v157, %v188
    %190 = vmatmul.f32.gmra.mxu0 %v169
    %v191 = vpop.f32.mrf.mxu0
    %v192 = vadd.f32 %v162, %v191
    %193 = vdwg.mxu0
    %v194 = vmax.f32 %v189, 0.0
    %v195 = vmax.f32 %v192, 0.0
    %v196 = vld [vmem:[%s0 + $0x30] sm:$0xff]
    %v197 = vld [vmem:[%s0 + $0x38] sm:$0xff]
    %v198 = vld [vmem:[%s0 + $0x70] sm:$0x1]
    %200 = vset.pattern.permute.xlu0 0
    %201 = vperm.xlu0 %200, %v196
    %v202 = vpop.permute.xlu0 %201
    %205 = vset.pattern.permute.xlu0 0
    %206 = vperm.xlu0 %205, %v197
    %v207 = vpop.permute.xlu0 %206
    %v209 = vmul.f32 %v202, %v194
    %v210 = vmul.f32 %v207, %v195
    %v211 = vadd.f32 %v209, %v210
    %v212 = vrot.slane %v211, 4
    %v213 = vadd.f32 %v211, %v212
    %v214 = vrot.slane %v213, 2
    %v215 = vadd.f32 %v213, %v214
    %v216 = vrot.slane %v215, 1
    %v217 = vadd.f32 %v215, %v216
    %219 = vset.pattern.permute.xlu0 0
    %220 = vperm.xlu0 %219, %v198
    %v221 = vpop.permute.xlu0 %220
    %v223 = vadd.f32 %v217, %v221
    %224 = vst [vmem:[#allocation2] sm:$0x1] %v223
    // Predicated region
    $region10: #{tpu_custom_call.1} parent=1 // pred_check
      _
    $region11: #{tpu_custom_call.1} parent=1 // pred_check_branch
      %226 = sbr.rel (0) target = $region13
    $region12: #{tpu_custom_call.1} parent=1 // pred_region
      %228 = vsyncadd [#allocation3], 0
      %s230 = sshll.u32 [#allocation2], 4
      %s231 = int_to_ptr.vmem [resolvable:$true] %s230
      %s232 = sshll.u32 %s2, 4
      %s233 = int_to_ptr.hbm [resolvable:$true] %s232
      %235 = dma.vmem_to_hbm [thread:$0]  %s231, 16, %s233, [#allocation3]
    $region13: #{tpu_custom_call.1} parent=1 // pred_fallthru
      _
    // Predicated region
    $region14: #{tpu_custom_call.1} parent=1 // pred_check
      _
    $region15: #{tpu_custom_call.1} parent=1 // pred_check_branch
      %237 = sbr.rel (0) target = $region17
    $region16: #{tpu_custom_call.1} parent=1 // pred_region
      %239 = dma.done [#allocation3], 16
    $region17: #{tpu_custom_call.1} parent=1 // pred_fallthru
      _
    %240 = vsyncpa [#allocation3], 1

</llo_original>
